<compile_context>
chip_gen: v7x
topology: tpu7x:2x2x1
jax: 0.10.0
libtpu: 0.0.40
codegen_flags: <defaults>
</compile_context>

<pallas_src>
import jax
import jax.numpy as jnp
from jax import lax
from jax.experimental import pallas as pl
from jax.experimental.pallas import tpu as pltpu


# Per-buffer block byte budget: with 3 double-buffered blocks (a, v, out) this
# stays well inside v7x's 32 MiB scoped-default VMEM.
_TARGET_BLOCK_BYTES = 2 << 20


def _concat_conv1x1_kernel(a_ref, v_ref, wa_ref, wv_ref, g_ref, b_ref, o_ref):
    # a_ref : (nb, A,  Tt)   audio block, native (N, C, T) layout, batch-tiled
    # v_ref : (nb, V,  Tv)   video block at its native temporal resolution
    # wa_ref: (Cout, A)      audio half of the 1x1 conv weight
    # wv_ref: (Cout, V)      video half of the 1x1 conv weight
    # g_ref : (Tv, Tt)       one-hot nearest-neighbour expansion (this time tile)
    # b_ref : (Cout, 1)      conv bias
    # o_ref : (nb, Cout, Tt)
    nb = a_ref.shape[0]
    wa = wa_ref[...]
    wv = wv_ref[...]
    g = g_ref[...]
    b = b_ref[...].astype(jnp.float32)

    def one_sample(i):
        a_i = a_ref[i]                              # (A, Tt)
        v_i = v_ref[i]                              # (V, Tv)
        # Nearest-neighbour interpolation as an exact one-hot selection, done
        # in the input/compute dtype (never upcasts G, never f32xf32 when the
        # compute dtype is bf16).
        v_exp = jnp.dot(v_i, g)                     # (V, Tt)
        acc = jnp.dot(wa, a_i, preferred_element_type=jnp.float32)
        acc = acc + jnp.dot(wv, v_exp, preferred_element_type=jnp.float32)
        o_ref[i] = (acc + b).astype(o_ref.dtype)

    if nb <= 8:
        # short, fixed trip-count: unroll for LLO scheduler visibility
        for i in range(nb):
            one_sample(i)
    else:
        def body(i, carry):
            one_sample(i)
            return carry
        lax.fori_loop(0, nb, body, 0)


def _pick_tiling(n, a_ch, v_ch, cout, ta, tv, itemsize):
    """Choose (samples-per-step, time-block) for the batch/time grid."""
    per_sample = (a_ch * ta + v_ch * tv + cout * ta) * itemsize
    nb = max(1, _TARGET_BLOCK_BYTES // max(per_sample, 1))
    nb = min(nb, 256)                 # bound in-kernel loop length
    if n >= 2:
        nb = min(nb, n // 2)          # keep >= 2 parallel grid steps (v7x 2 TCs)
    nb = max(1, min(nb, n))

    t_blk = ta
    # TODO(synk): also handle long Ta that is not a multiple of 128 (would need
    # a padded time axis); for now only tile time when 128-divisible.
    if nb == 1 and per_sample > _TARGET_BLOCK_BYTES and ta % 128 == 0:
        while (t_blk % 2 == 0 and (t_blk // 2) % 128 == 0
               and (a_ch + cout) * t_blk * itemsize > _TARGET_BLOCK_BYTES):
            t_blk //= 2
    return nb, t_blk


def concat_forward(a, v, weight, bias, *, compute_dtype=None):
    """
    a:      (N, A, Ta)       audio features
    v:      (N, V, Tv)       video features
    weight: (Cout, A+V, 1)   Conv1d weight
    bias:   (Cout,)          Conv1d bias
    returns (N, Cout, Ta)
    """
    N, A, Ta = a.shape
    Nv, V, Tv = v.shape
    assert Nv == N
    Cout, Cin, kw = weight.shape
    assert Cin == A + V and kw == 1
    out_dtype = a.dtype
    cdt = compute_dtype if compute_dtype is not None else a.dtype
    itemsize = jnp.dtype(cdt).itemsize

    nb, t_blk = _pick_tiling(N, A, V, Cout, Ta, Tv, itemsize)

    n_pad = -(-N // nb) * nb
    if n_pad != N:
        a = jnp.pad(a, ((0, n_pad - N), (0, 0), (0, 0)))
        v = jnp.pad(v, ((0, n_pad - N), (0, 0), (0, 0)))

    # Split the 1x1 conv weight into its audio / video halves.
    wa = weight[:, :A, 0]                                   # (Cout, A)
    wv = weight[:, A:, 0]                                   # (Cout, V)
    b2 = bias.reshape(Cout, 1).astype(jnp.float32)          # (Cout, 1)

    # PyTorch default mode='nearest': src = floor(dst * Tv / Ta)
    src = jnp.minimum((jnp.arange(Ta) * Tv) // Ta, Tv - 1)
    g = (jnp.arange(Tv)[:, None] == src[None, :]).astype(cdt)   # (Tv, Ta)

    if compute_dtype is not None:                           # e.g. bf16 on v6e/v7x
        a = a.astype(compute_dtype)
        v = v.astype(compute_dtype)
        wa = wa.astype(compute_dtype)
        wv = wv.astype(compute_dtype)

    grid = (n_pad // nb, Ta // t_blk)

    # Size the scoped VMEM limit from the actual (double-buffered) footprint.
    blk = 2 * (nb * A * t_blk + nb * V * Tv + nb * Cout * t_blk) * itemsize
    blk += (Cout * A + Cout * V + Tv * t_blk) * itemsize + Cout * 4
    vmem_limit = int(min(32 << 20, max(16 << 20, 2 * blk)))

    out = pl.pallas_call(
        _concat_conv1x1_kernel,
        out_shape=jax.ShapeDtypeStruct((n_pad, Cout, Ta), out_dtype),
        grid_spec=pltpu.PrefetchScalarGridSpec(
            num_scalar_prefetch=0,
            grid=grid,
            in_specs=[
                pl.BlockSpec((nb, A, t_blk), lambda i, j: (i, 0, j)),   # audio
                pl.BlockSpec((nb, V, Tv), lambda i, j: (i, 0, 0)),      # video
                pl.BlockSpec((Cout, A), lambda i, j: (0, 0)),           # W_a
                pl.BlockSpec((Cout, V), lambda i, j: (0, 0)),           # W_v
                pl.BlockSpec((Tv, t_blk), lambda i, j: (0, j)),         # G
                pl.BlockSpec((Cout, 1), lambda i, j: (0, 0)),           # bias
            ],
            out_specs=pl.BlockSpec((nb, Cout, t_blk), lambda i, j: (i, 0, j)),
        ),
        compiler_params=pltpu.CompilerParams(
            dimension_semantics=("parallel", "parallel"),
            vmem_limit_bytes=vmem_limit),
    )(a, v, wa, wv, g, b2)

    # Padded batch rows (bias-only) are dropped here.
    return out[:N]


if __name__ == "__main__":
    # small shapes consistent with the module's forward
    N = 2
    audio_channels = 4
    video_channels = 6
    out_channels = 8
    Ta = 16
    Tv = 8

    key = jax.random.PRNGKey(0)
    k_a, k_v, k_w, k_b = jax.random.split(key, 4)

    a = jax.random.normal(k_a, (N, audio_channels, Ta), dtype=jnp.float32)
    v = jax.random.normal(k_v, (N, video_channels, Tv), dtype=jnp.float32)

    # deterministic Conv1d parameters (synthetic init, not a checkpoint)
    cin = audio_channels + video_channels
    weight = jax.random.normal(k_w, (out_channels, cin, 1), dtype=jnp.float32) * 0.1
    bias = jax.random.normal(k_b, (out_channels,), dtype=jnp.float32) * 0.1

    out = concat_forward(a, v, weight, bias)
    out = jax.block_until_ready(out)

    # pure-JAX reference check of the same semantics
    dst = jnp.arange(Ta)
    src = jnp.minimum((dst * Tv) // Ta, Tv - 1)
    v_i = v[:, :, src]
    y = jnp.concatenate([a, v_i], axis=1)                       # (N, Cin, Ta)
    ref = jnp.einsum("oc,nct->not", weight[:, :, 0], y) + bias[None, :, None]
    assert out.shape == (N, out_channels, Ta)
    assert jnp.allclose(out, ref, atol=1e-4, rtol=1e-4)

    print("KERNEL_OK")
</pallas_src>

<mosaic_0001>
module attributes {stable_mosaic.version = 11 : i64} {
  func.func @_concat_conv1x1_kernel(%arg0: i32, %arg1: i32, %arg2: memref<1x4x16xf32, #tpu.memory_space<vmem>>, %arg3: memref<1x6x8xf32, #tpu.memory_space<vmem>>, %arg4: memref<8x4xf32, #tpu.memory_space<vmem>>, %arg5: memref<8x6xf32, #tpu.memory_space<vmem>>, %arg6: memref<8x16xf32, #tpu.memory_space<vmem>>, %arg7: memref<8x1xf32, #tpu.memory_space<vmem>>, %arg8: memref<1x8x16xf32, #tpu.memory_space<vmem>>) attributes {dimension_semantics = [#tpu.dimension_semantics<parallel>, #tpu.dimension_semantics<parallel>], iteration_bounds = array<i64: 2, 1>, scalar_prefetch = 0 : i64, scratch_operands = 0 : i64, tpu.core_type = #tpu.core_type<tc>, window_params = [{transform_indices = @transform_0, window_bounds = array<i64: 1, 4, 16>}, {transform_indices = @transform_1, window_bounds = array<i64: 1, 6, 8>}, {pipeline_mode = #tpu.pipeline_mode<synchronous>, transform_indices = @transform_2, window_bounds = array<i64: 8, 4>}, {pipeline_mode = #tpu.pipeline_mode<synchronous>, transform_indices = @transform_3, window_bounds = array<i64: 8, 6>}, {transform_indices = @transform_4, window_bounds = array<i64: 8, 16>}, {pipeline_mode = #tpu.pipeline_mode<synchronous>, transform_indices = @transform_5, window_bounds = array<i64: 8, 1>}, {transform_indices = @transform_6, window_bounds = array<i64: 1, 8, 16>}]} {
    %c0 = arith.constant 0 : index
    %c0_0 = arith.constant 0 : index
    %0 = vector.load %arg4[%c0, %c0_0] : memref<8x4xf32, #tpu.memory_space<vmem>>, vector<8x4xf32>
    %c0_1 = arith.constant 0 : index
    %c0_2 = arith.constant 0 : index
    %1 = vector.load %arg5[%c0_1, %c0_2] : memref<8x6xf32, #tpu.memory_space<vmem>>, vector<8x6xf32>
    %c0_3 = arith.constant 0 : index
    %c0_4 = arith.constant 0 : index
    %2 = vector.load %arg6[%c0_3, %c0_4] : memref<8x16xf32, #tpu.memory_space<vmem>>, vector<8x16xf32>
    %c0_5 = arith.constant 0 : index
    %c0_6 = arith.constant 0 : index
    %3 = vector.load %arg7[%c0_5, %c0_6] : memref<8x1xf32, #tpu.memory_space<vmem>>, vector<8x1xf32>
    %c0_7 = arith.constant 0 : index
    %c0_8 = arith.constant 0 : index
    %c0_9 = arith.constant 0 : index
    %4 = vector.load %arg2[%c0_7, %c0_8, %c0_9] : memref<1x4x16xf32, #tpu.memory_space<vmem>>, vector<1x4x16xf32>
    %5 = vector.shape_cast %4 : vector<1x4x16xf32> to vector<4x16xf32>
    %c0_10 = arith.constant 0 : index
    %c0_11 = arith.constant 0 : index
    %c0_12 = arith.constant 0 : index
    %6 = vector.load %arg3[%c0_10, %c0_11, %c0_12] : memref<1x6x8xf32, #tpu.memory_space<vmem>>, vector<1x6x8xf32>
    %7 = vector.shape_cast %6 : vector<1x6x8xf32> to vector<6x8xf32>
    %cst = arith.constant dense<0.000000e+00> : vector<6x16xf32>
    %8 = tpu.matmul %7, %2, %cst {dimension_numbers = #tpu.dot_dimension_numbers<[1], [0], [0], [1], [0, 0, 1, 1], [], []>} : vector<6x8xf32>, vector<8x16xf32>, vector<6x16xf32> -> vector<6x16xf32>
    %cst_13 = arith.constant dense<0.000000e+00> : vector<8x16xf32>
    %9 = tpu.matmul %0, %5, %cst_13 {dimension_numbers = #tpu.dot_dimension_numbers<[1], [0], [0], [1], [0, 0, 1, 1], [], []>} : vector<8x4xf32>, vector<4x16xf32>, vector<8x16xf32> -> vector<8x16xf32>
    %cst_14 = arith.constant dense<0.000000e+00> : vector<8x16xf32>
    %10 = tpu.matmul %1, %8, %cst_14 {dimension_numbers = #tpu.dot_dimension_numbers<[1], [0], [0], [1], [0, 0, 1, 1], [], []>} : vector<8x6xf32>, vector<6x16xf32>, vector<8x16xf32> -> vector<8x16xf32>
    %11 = arith.addf %9, %10 : vector<8x16xf32>
    %12 = vector.broadcast %3 : vector<8x1xf32> to vector<8x16xf32>
    %13 = arith.addf %11, %12 : vector<8x16xf32>
    %c0_15 = arith.constant 0 : index
    %c0_16 = arith.constant 0 : index
    %c0_17 = arith.constant 0 : index
    %14 = vector.load %arg8[%c0_15, %c0_16, %c0_17] : memref<1x8x16xf32, #tpu.memory_space<vmem>>, vector<1x8x16xf32>
    %15 = vector.shape_cast %14 : vector<1x8x16xf32> to vector<8x16xf32>
    %16 = vector.shape_cast %13 : vector<8x16xf32> to vector<1x8x16xf32>
    tpu.vector_store %arg8[%c0_15, %c0_16, %c0_17], %16 {strides = array<i32>} : memref<1x8x16xf32, #tpu.memory_space<vmem>>, vector<1x8x16xf32>,
    return
  }
  func.func @transform_0(%arg0: i32, %arg1: i32) -> (i32, i32, i32) {
    %c0_i32 = arith.constant 0 : i32
    %c0_i32_0 = arith.constant 0 : i32
    return %arg0, %c0_i32, %arg1 : i32, i32, i32
  }
  func.func @transform_1(%arg0: i32, %arg1: i32) -> (i32, i32, i32) {
    %c0_i32 = arith.constant 0 : i32
    %c0_i32_0 = arith.constant 0 : i32
    %c0_i32_1 = arith.constant 0 : i32
    return %arg0, %c0_i32, %c0_i32_0 : i32, i32, i32
  }
  func.func @transform_2(%arg0: i32, %arg1: i32) -> (i32, i32) {
    %c0_i32 = arith.constant 0 : i32
    %c0_i32_0 = arith.constant 0 : i32
    %c0_i32_1 = arith.constant 0 : i32
    return %c0_i32, %c0_i32_0 : i32, i32
  }
  func.func @transform_3(%arg0: i32, %arg1: i32) -> (i32, i32) {
    %c0_i32 = arith.constant 0 : i32
    %c0_i32_0 = arith.constant 0 : i32
    %c0_i32_1 = arith.constant 0 : i32
    return %c0_i32, %c0_i32_0 : i32, i32
  }
  func.func @transform_4(%arg0: i32, %arg1: i32) -> (i32, i32) {
    %c0_i32 = arith.constant 0 : i32
    %c0_i32_0 = arith.constant 0 : i32
    return %c0_i32, %arg1 : i32, i32
  }
  func.func @transform_5(%arg0: i32, %arg1: i32) -> (i32, i32) {
    %c0_i32 = arith.constant 0 : i32
    %c0_i32_0 = arith.constant 0 : i32
    %c0_i32_1 = arith.constant 0 : i32
    return %c0_i32, %c0_i32_0 : i32, i32
  }
  func.func @transform_6(%arg0: i32, %arg1: i32) -> (i32, i32, i32) {
    %c0_i32 = arith.constant 0 : i32
    %c0_i32_0 = arith.constant 0 : i32
    return %arg0, %c0_i32, %arg1 : i32, i32, i32
  }
}

</mosaic_0001>

<llo_original>
// kernel: tpu_custom_call.1
$region0: #{tpu_custom_call.1}
  #allocation0 [shape = 'u32[]', space=smem, size = 0x4, offset = 0x4, fixed_abs, tag = 'smem constant byte address 0x4 - core index']
  #allocation1 [shape = 'u32[144,128]{1,0:T(1,128)}', space=vmem, size = 0x12000, scoped, tag = 'internal scratch']
  %s0 = inlined_call_operand.vmem [shape: f32[2,4,16], index: 0, kind: input, shape index: {}]
  %s1 = inlined_call_operand.vmem [shape: f32[2,6,8], index: 1, kind: input, shape index: {}]
  %s2 = inlined_call_operand.vmem [shape: f32[8,4], index: 2, kind: input, shape index: {}]
  %s3 = inlined_call_operand.vmem [shape: f32[8,6], index: 3, kind: input, shape index: {}]
  %s4 = inlined_call_operand.vmem [shape: f32[8,16], index: 4, kind: input, shape index: {}]
  %s5 = inlined_call_operand.vmem [shape: f32[8,1], index: 5, kind: input, shape index: {}]
  %s6 = inlined_call_operand.hbm [shape: f32[2,8,16], index: 6, kind: output, shape index: {}]
  %s7 = sld [smem:[#allocation0]]
  $region57: #{tpu_custom_call.1} parent=0
    _
  %s9 = ssub.s32 1, %s7
  %s10 = scalar_select 0, %s9, %s7
  $region1: #{tpu_custom_call.1} parent=0
    #allocation2 [shape = 'u8[8192]{0}', space=vmem, size = 0x2000, scoped, tag = 'output window, operand 0']
    #allocation3 [shape = 's32[2]{0}', space=sflag, size = 0x8, scoped, tag = 'scoped memory for tpu_custom_call.1']
    %11 = vsyncpa [#allocation3], 0
    %s12 = scalar_lea.sflag [#allocation3], 1
    %13 = vsyncpa %s12, 0
    loop: start=0, step=1, limit=4
    $region2: #{tpu_custom_call.1} parent=1 // loop_pre_header
      _
    $region3: #{tpu_custom_call.1} parent=1 // loop_header
      %s15 = sphi 0, %s19
      %p16 = scmp.ge.s32.totalorder %s15, 4
      %s22 = sphi 0, %s34
      %s23 = sphi 0, %s30
      %s24 = sphi 0, %s22
      %s25 = sphi 0, %s23
      %s26 = sphi 0, %s24
      %s27 = sphi 0, %s25
      %s39 = sphi 0, %s41
      %s42 = sphi 0, %s39
      %s43 = sphi 0, %s42
      %s59 = sphi 0, %s43
      %s65 = sphi 0, %s67
      %s68 = sphi 0, %s65
      %s69 = sphi 0, %s68
      %s85 = sphi 0, %s69
      %s89 = sphi 0, %s89
      %s91 = sphi 0, %s89
      %s92 = sphi 0, %s91
      %s106 = sphi 0, %s92
      %s110 = sphi 0, %s110
      %s112 = sphi 0, %s110
      %s113 = sphi 0, %s112
      %s127 = sphi 0, %s113
      %s133 = sphi 0, %s135
      %s136 = sphi 0, %s133
      %s137 = sphi 0, %s136
      %s153 = sphi 0, %s137
      %s157 = sphi 0, %s157
      %s159 = sphi 0, %s157
      %s160 = sphi 0, %s159
      %s174 = sphi 0, %s160
      %s182 = sphi 0, %s184
      %s185 = sphi 0, %s182
      %s186 = sphi 0, %s185
      %s202 = sphi 0, %s186
    $region4: #{tpu_custom_call.1} parent=1 // loop_header_branch
      %18 = sbr.rel (%p16) target = $region8
    $region5: #{tpu_custom_call.1} parent=1 // loop_body
      %s20 = ssub.s32 %s15, 1
      %s21 = ssub.s32 %s15, 2
      %s28 = sadd.s32 1, %s23
      %p29 = scmp.ge.s32.totalorder %s28, 1
      %s30 = scalar_select %p29, 0, %s28
      %s31 = sadd.s32 1, %s22
      %s32 = scalar_select %p29, %s31, %s22
      %p33 = scmp.ge.s32.totalorder %s32, 2
      %s34 = scalar_select %p33, 0, %s32
      %s35 = ssub.s32 %s22, %s34
      %s36 = ssub.s32 %s23, %s30
      %s37 = sor.u32 %s35, %s36
      %p38 = scmp.eq.s32.totalorder %s37, 0
      %s40 = sadd.s32 %s39, 1
      %s41 = scalar_select %p38, %s39, %s40
      %p44 = pneg %p38
      %p45 = scmp.eq.s32.totalorder %s15, 1
      %p46 = por %p44, %p45
      %p47 = scmp.ne.s32.totalorder %s39, %s42
      %p48 = scmp.eq.s32.totalorder %s15, 0
      %p49 = por %p47, %p48
      %p50 = scmp.ne.s32.totalorder %s39, %s42
      %p51 = scmp.eq.s32.totalorder %s20, 1
      %p52 = por %p50, %p51
      %p53 = scmp.ne.s32.totalorder %s42, %s43
      %p54 = scmp.eq.s32.totalorder %s20, 0
      %p55 = por %p53, %p54
      %p56 = scmp.ne.s32.totalorder %s42, %s43
      %p57 = scmp.eq.s32.totalorder %s21, 1
      %p58 = por %p56, %p57
      %p60 = scmp.ne.s32.totalorder %s43, %s59
      %p61 = scmp.eq.s32.totalorder %s21, 0
      %p62 = por %p60, %p61
      %s63 = ssub.s32 %s22, %s34
      %p64 = scmp.eq.s32.totalorder %s63, 0
      %s66 = sadd.s32 %s65, 1
      %s67 = scalar_select %p64, %s65, %s66
      %p70 = pneg %p64
      %p71 = scmp.eq.s32.totalorder %s15, 1
      %p72 = por %p70, %p71
      %p73 = scmp.ne.s32.totalorder %s65, %s68
      %p74 = scmp.eq.s32.totalorder %s15, 0
      %p75 = por %p73, %p74
      %p76 = scmp.ne.s32.totalorder %s65, %s68
      %p77 = scmp.eq.s32.totalorder %s20, 1
      %p78 = por %p76, %p77
      %p79 = scmp.ne.s32.totalorder %s68, %s69
      %p80 = scmp.eq.s32.totalorder %s20, 0
      %p81 = por %p79, %p80
      %p82 = scmp.ne.s32.totalorder %s68, %s69
      %p83 = scmp.eq.s32.totalorder %s21, 1
      %p84 = por %p82, %p83
      %p86 = scmp.ne.s32.totalorder %s69, %s85
      %p87 = scmp.eq.s32.totalorder %s21, 0
      %p88 = por %p86, %p87
      %s90 = sadd.s32 %s89, 1
      %p93 = scmp.eq.s32.totalorder %s15, 1
      %p94 = scmp.ne.s32.totalorder %s89, %s91
      %p95 = scmp.eq.s32.totalorder %s15, 0
      %p96 = por %p94, %p95
      %p97 = scmp.ne.s32.totalorder %s89, %s91
      %p98 = scmp.eq.s32.totalorder %s20, 1
      %p99 = por %p97, %p98
      %p100 = scmp.ne.s32.totalorder %s91, %s92
      %p101 = scmp.eq.s32.totalorder %s20, 0
      %p102 = por %p100, %p101
      %p103 = scmp.ne.s32.totalorder %s91, %s92
      %p104 = scmp.eq.s32.totalorder %s21, 1
      %p105 = por %p103, %p104
      %p107 = scmp.ne.s32.totalorder %s92, %s106
      %p108 = scmp.eq.s32.totalorder %s21, 0
      %p109 = por %p107, %p108
      %s111 = sadd.s32 %s110, 1
      %p114 = scmp.eq.s32.totalorder %s15, 1
      %p115 = scmp.ne.s32.totalorder %s110, %s112
      %p116 = scmp.eq.s32.totalorder %s15, 0
      %p117 = por %p115, %p116
      %p118 = scmp.ne.s32.totalorder %s110, %s112
      %p119 = scmp.eq.s32.totalorder %s20, 1
      %p120 = por %p118, %p119
      %p121 = scmp.ne.s32.totalorder %s112, %s113
      %p122 = scmp.eq.s32.totalorder %s20, 0
      %p123 = por %p121, %p122
      %p124 = scmp.ne.s32.totalorder %s112, %s113
      %p125 = scmp.eq.s32.totalorder %s21, 1
      %p126 = por %p124, %p125
      %p128 = scmp.ne.s32.totalorder %s113, %s127
      %p129 = scmp.eq.s32.totalorder %s21, 0
      %p130 = por %p128, %p129
      %s131 = ssub.s32 %s23, %s30
      %p132 = scmp.eq.s32.totalorder %s131, 0
      %s134 = sadd.s32 %s133, 1
      %s135 = scalar_select %p132, %s133, %s134
      %p138 = pneg %p132
      %p139 = scmp.eq.s32.totalorder %s15, 1
      %p140 = por %p138, %p139
      %p141 = scmp.ne.s32.totalorder %s133, %s136
      %p142 = scmp.eq.s32.totalorder %s15, 0
      %p143 = por %p141, %p142
      %p144 = scmp.ne.s32.totalorder %s133, %s136
      %p145 = scmp.eq.s32.totalorder %s20, 1
      %p146 = por %p144, %p145
      %p147 = scmp.ne.s32.totalorder %s136, %s137
      %p148 = scmp.eq.s32.totalorder %s20, 0
      %p149 = por %p147, %p148
      %p150 = scmp.ne.s32.totalorder %s136, %s137
      %p151 = scmp.eq.s32.totalorder %s21, 1
      %p152 = por %p150, %p151
      %p154 = scmp.ne.s32.totalorder %s137, %s153
      %p155 = scmp.eq.s32.totalorder %s21, 0
      %p156 = por %p154, %p155
      %s158 = sadd.s32 %s157, 1
      %p161 = scmp.eq.s32.totalorder %s15, 1
      %p162 = scmp.ne.s32.totalorder %s157, %s159
      %p163 = scmp.eq.s32.totalorder %s15, 0
      %p164 = por %p162, %p163
      %p165 = scmp.ne.s32.totalorder %s157, %s159
      %p166 = scmp.eq.s32.totalorder %s20, 1
      %p167 = por %p165, %p166
      %p168 = scmp.ne.s32.totalorder %s159, %s160
      %p169 = scmp.eq.s32.totalorder %s20, 0
      %p170 = por %p168, %p169
      %p171 = scmp.ne.s32.totalorder %s159, %s160
      %p172 = scmp.eq.s32.totalorder %s21, 1
      %p173 = por %p171, %p172
      %p175 = scmp.ne.s32.totalorder %s160, %s174
      %p176 = scmp.eq.s32.totalorder %s21, 0
      %p177 = por %p175, %p176
      %s178 = ssub.s32 %s22, %s34
      %s179 = ssub.s32 %s23, %s30
      %s180 = sor.u32 %s178, %s179
      %p181 = scmp.eq.s32.totalorder %s180, 0
      %s183 = sadd.s32 %s182, 1
      %s184 = scalar_select %p181, %s182, %s183
      %p187 = pneg %p181
      %p188 = scmp.eq.s32.totalorder %s15, 1
      %p189 = por %p187, %p188
      %p190 = scmp.ne.s32.totalorder %s182, %s185
      %p191 = scmp.eq.s32.totalorder %s15, 0
      %p192 = por %p190, %p191
      %p193 = scmp.ne.s32.totalorder %s182, %s185
      %p194 = scmp.eq.s32.totalorder %s20, 1
      %p195 = por %p193, %p194
      %p196 = scmp.ne.s32.totalorder %s185, %s186
      %p197 = scmp.eq.s32.totalorder %s20, 0
      %p198 = por %p196, %p197
      %p199 = scmp.ne.s32.totalorder %s185, %s186
      %p200 = scmp.eq.s32.totalorder %s21, 1
      %p201 = por %p199, %p200
      %p203 = scmp.ne.s32.totalorder %s186, %s202
      %p204 = scmp.eq.s32.totalorder %s21, 0
      %p205 = por %p203, %p204
      %p206 = scmp.le.s32.totalorder 1, %s15
      %p207 = scmp.lt.s32.totalorder %s15, 3
      %p208 = pnand %p206, %p207
      %p209 = pneg %p208
      // Predicated region
      $region9: #{tpu_custom_call.1} parent=5 // pred_check
        _
      $region10: #{tpu_custom_call.1} parent=5 // pred_check_branch
        %211 = sbr.rel (%p208) target = $region12
      $region11: #{tpu_custom_call.1} parent=5 // pred_region
        %s212 = ssub.s32 %s15, 1
        // Predicated region
        $region13: #{tpu_custom_call.1} parent=11 // pred_check
          %p213 = pneg %p102
        $region14: #{tpu_custom_call.1} parent=11 // pred_check_branch
          %215 = sbr.rel (%p213) target = $region16
        $region15: #{tpu_custom_call.1} parent=11 // pred_region
          _
        $region16: #{tpu_custom_call.1} parent=11 // pred_fallthru
          _
        // Predicated region
        $region17: #{tpu_custom_call.1} parent=11 // pred_check
          %p216 = pneg %p123
        $region18: #{tpu_custom_call.1} parent=11 // pred_check_branch
          %218 = sbr.rel (%p216) target = $region20
        $region19: #{tpu_custom_call.1} parent=11 // pred_region
          _
        $region20: #{tpu_custom_call.1} parent=11 // pred_fallthru
          _
        // Predicated region
        $region21: #{tpu_custom_call.1} parent=11 // pred_check
          %p219 = pneg %p149
        $region22: #{tpu_custom_call.1} parent=11 // pred_check_branch
          %221 = sbr.rel (%p219) target = $region24
        $region23: #{tpu_custom_call.1} parent=11 // pred_region
          %p222 = scmp.lt.s32.totalorder %s25, 0
          %s223 = scalar_select %p222, %s25, 0
          %s224 = smul.addr %s223, 8
          %s225 = scalar_lea.vmem %s4, %s224
        $region24: #{tpu_custom_call.1} parent=11 // pred_fallthru
          _
        // Predicated region
        $region25: #{tpu_custom_call.1} parent=11 // pred_check
          %p226 = pneg %p170
        $region26: #{tpu_custom_call.1} parent=11 // pred_check_branch
          %228 = sbr.rel (%p226) target = $region28
        $region27: #{tpu_custom_call.1} parent=11 // pred_region
          _
        $region28: #{tpu_custom_call.1} parent=11 // pred_fallthru
          _
      $region12: #{tpu_custom_call.1} parent=5 // pred_fallthru
        _
      %p229 = scmp.lt.s32.totalorder %s15, 2
      // Predicated region
      $region29: #{tpu_custom_call.1} parent=5 // pred_check
        %p230 = pneg %p229
      $region30: #{tpu_custom_call.1} parent=5 // pred_check_branch
        %232 = sbr.rel (%p230) target = $region32
      $region31: #{tpu_custom_call.1} parent=5 // pred_region
        // Predicated region
        $region33: #{tpu_custom_call.1} parent=31 // pred_check
          %p233 = pneg %p49
        $region34: #{tpu_custom_call.1} parent=31 // pred_check_branch
          %235 = sbr.rel (%p233) target = $region36
        $region35: #{tpu_custom_call.1} parent=31 // pred_region
          %p236 = scmp.lt.s32.totalorder %s22, 1
          %s237 = scalar_select %p236, %s22, 1
          %p238 = scmp.lt.s32.totalorder %s23, 0
          %s239 = scalar_select %p238, %s23, 0
          %s240 = sadd.s32 %s239, %s237
          %s241 = smul.addr %s240, 4
          %s242 = scalar_lea.vmem %s0, %s241
        $region36: #{tpu_custom_call.1} parent=31 // pred_fallthru
          _
        // Predicated region
        $region37: #{tpu_custom_call.1} parent=31 // pred_check
          %p243 = pneg %p75
        $region38: #{tpu_custom_call.1} parent=31 // pred_check_branch
          %245 = sbr.rel (%p243) target = $region40
        $region39: #{tpu_custom_call.1} parent=31 // pred_region
          %p246 = scmp.lt.s32.totalorder %s22, 1
          %s247 = scalar_select %p246, %s22, 1
          %s248 = smul.addr %s247, 8
          %s249 = scalar_lea.vmem %s1, %s248
        $region40: #{tpu_custom_call.1} parent=31 // pred_fallthru
          _
      $region32: #{tpu_custom_call.1} parent=5 // pred_fallthru
        _
      %p250 = scmp.le.s32.totalorder 1, %s15
      %p251 = scmp.lt.s32.totalorder %s15, 3
      %p252 = pnand %p250, %p251
      %p253 = pneg %p252
      // Predicated region
      $region41: #{tpu_custom_call.1} parent=5 // pred_check
        _
      $region42: #{tpu_custom_call.1} parent=5 // pred_check_branch
        %255 = sbr.rel (%p252) target = $region44
      $region43: #{tpu_custom_call.1} parent=5 // pred_region
        %s256 = ssub.s32 %s15, 1
        %p257 = scmp.lt.s32.totalorder %s24, 1
        %s258 = scalar_select %p257, %s24, 1
        %p259 = scmp.lt.s32.totalorder %s25, 0
        %s260 = scalar_select %p259, %s25, 0
        %s261 = sadd.s32 %s260, %s258
        %s262 = smul.addr %s261, 4
        %s263 = scalar_lea.vmem %s0, %s262
        %p264 = pneg %p55
        %p265 = pneg %p52
        %p266 = scmp.lt.s32.totalorder %s24, 1
        %s267 = scalar_select %p266, %s24, 1
        %s268 = smul.addr %s267, 8
        %s269 = scalar_lea.vmem %s1, %s268
        %p270 = pneg %p81
        %p271 = pneg %p78
        %p272 = pneg %p102
        %p273 = pneg %p99
        %p274 = pneg %p123
        %p275 = pneg %p120
        %p276 = scmp.lt.s32.totalorder %s25, 0
        %s277 = scalar_select %p276, %s25, 0
        %s278 = smul.addr %s277, 8
        %s279 = scalar_lea.vmem %s4, %s278
        %p280 = pneg %p149
        %p281 = pneg %p146
        %p282 = pneg %p170
        %p283 = pneg %p167
        %p284 = pneg %p198
        %p285 = pneg %p195
        %s286 = sand.u32 %s185, 1
        %s287 = scalar_lea.sflag [#allocation3], %s286
        %s288 = sand.u32 %s185, 1
        %s289 = smul.addr %s288, 8
        %s290 = scalar_lea.vmem [#allocation2], %s289
        %p291 = scmp.lt.s32.totalorder %s24, 1
        %s292 = scalar_select %p291, %s24, 1
        %p293 = scmp.lt.s32.totalorder %s25, 0
        %s294 = scalar_select %p293, %s25, 0
        %s295 = sadd.s32 %s294, %s292
        %s296 = smul.addr %s295, 4
        %s297 = scalar_lea.vmem %s0, %s296
        %p298 = scmp.lt.s32.totalorder %s24, 1
        %s299 = scalar_select %p298, %s24, 1
        %s300 = smul.addr %s299, 8
        %s301 = scalar_lea.vmem %s1, %s300
        %p302 = scmp.lt.s32.totalorder %s25, 0
        %s303 = scalar_select %p302, %s25, 0
        %s304 = smul.addr %s303, 8
        %s305 = scalar_lea.vmem %s4, %s304
        %v306 = vld [vmem:[%s2] sm:$0xff]
        %v307 = vld [vmem:[%s3] sm:$0xff]
        %v308 = vld [vmem:[%s305] sm:$0xff]
        %v309 = vld [vmem:[%s5] sm:$0xff]
        %v310 = vld [vmem:[%s297] sm:$0xf]
        %v311 = vld [vmem:[%s301] sm:$0x3f]
        %vm312 = vcmask 64512
        %v314 = vsel %vm312, %v311, 0
        %316 = vmatprep.subr.mxu0 0.0
        %317 = vmatpush1.msra.mxu0 %v308
        %318 = vmatprep.subr.mxu0 0.0
        %319 = vmatpush1.msra.mxu0 0.0
        %320 = vmatprep.subr.mxu0 0.0
        %321 = vmatpush1.msra.mxu0 0.0
        %322 = vmatprep.subr.mxu0 0.0
        %323 = vmatpush1.msra.mxu0 0.0
        %324 = vmatprep.subr.mxu0 0.0
        %325 = vmatpush1.msra.mxu0 0.0
        %326 = vmatprep.subr.mxu0 0.0
        %327 = vmatpush1.msra.mxu0 0.0
        %328 = vmatprep.subr.mxu0 0.0
        %329 = vmatpush1.msra.mxu0 0.0
        %330 = vmatprep.subr.mxu0 0.0
        %331 = vmatpush1.msra.mxu0 0.0
        %332 = vmatprep.subr.mxu0 0.0
        %333 = vmatpush1.msra.mxu0 0.0
        %334 = vmatprep.subr.mxu0 0.0
        %335 = vmatpush1.msra.mxu0 0.0
        %336 = vmatprep.subr.mxu0 0.0
        %337 = vmatpush1.msra.mxu0 0.0
        %338 = vmatprep.subr.mxu0 0.0
        %339 = vmatpush1.msra.mxu0 0.0
        %340 = vmatprep.subr.mxu0 0.0
        %341 = vmatpush1.msra.mxu0 0.0
        %342 = vmatprep.subr.mxu0 0.0
        %343 = vmatpush1.msra.mxu0 0.0
        %344 = vmatprep.subr.mxu0 0.0
        %345 = vmatpush1.msra.mxu0 0.0
        %346 = vmatprep.subr.mxu0 0.0
        %347 = vmatpush1.msra.mxu0 0.0
        %348 = vmatprep.subr.mxu0 0.0
        %349 = vmatpush1.msra.mxu0 0.0
        %350 = vmatprep.subr.mxu0 0.0
        %351 = vmatpush1.msra.mxu0 0.0
        %352 = vmatprep.subr.mxu0 0.0
        %353 = vmatpush1.msra.mxu0 0.0
        %354 = vmatprep.subr.mxu0 0.0
        %355 = vmatpush1.msra.mxu0 0.0
        %356 = vmatprep.subr.mxu0 0.0
        %357 = vmatpush1.msra.mxu0 0.0
        %358 = vmatprep.subr.mxu0 0.0
        %359 = vmatpush1.msra.mxu0 0.0
        %360 = vmatprep.subr.mxu0 0.0
        %361 = vmatpush1.msra.mxu0 0.0
        %362 = vmatprep.subr.mxu0 0.0
        %363 = vmatpush1.msra.mxu0 0.0
        %364 = vmatprep.subr.mxu0 0.0
        %365 = vmatpush1.msra.mxu0 0.0
        %366 = vmatprep.subr.mxu0 0.0
        %367 = vmatpush1.msra.mxu0 0.0
        %368 = vmatprep.subr.mxu0 0.0
        %369 = vmatpush1.msra.mxu0 0.0
        %370 = vmatprep.subr.mxu0 0.0
        %371 = vmatpush1.msra.mxu0 0.0
        %372 = vmatprep.subr.mxu0 0.0
        %373 = vmatpush1.msra.mxu0 0.0
        %374 = vmatprep.subr.mxu0 0.0
        %375 = vmatpush1.msra.mxu0 0.0
        %376 = vmatprep.subr.mxu0 0.0
        %377 = vmatpush1.msra.mxu0 0.0
        %378 = vmatprep.subr.mxu0 0.0
        %379 = vmatpush1.msra.mxu0 0.0
        %380 = vmatprep.mubr.f32.mxu0 0.0
        %381 = vmatmul.mubr.f32.gmra.mrb[0].mxu0 %v314
        %v382 = vpop.f32.mrb[0].mxu0
        %v383 = vadd.f32 0.0, %v382
        %v384 = vpop.f32.mrb[0].mxu0
        %385 = vdwg.mxu0
        %vm386 = vcmask 48128
        %v388 = vsel %vm386, %v307, 0
        %vm390 = vcmask 1045504
        %v392 = vsel %vm390, %v383, 0
        %394 = vmatprep.subr.mxu0 0.0
        %395 = vmatpush1.msra.mxu0 %v392
        %396 = vmatprep.subr.mxu0 0.0
        %397 = vmatpush1.msra.mxu0 0.0
        %398 = vmatprep.subr.mxu0 0.0
        %399 = vmatpush1.msra.mxu0 0.0
        %400 = vmatprep.subr.mxu0 0.0
        %401 = vmatpush1.msra.mxu0 0.0
        %402 = vmatprep.subr.mxu0 0.0
        %403 = vmatpush1.msra.mxu0 0.0
        %404 = vmatprep.subr.mxu0 0.0
        %405 = vmatpush1.msra.mxu0 0.0
        %406 = vmatprep.subr.mxu0 0.0
        %407 = vmatpush1.msra.mxu0 0.0
        %408 = vmatprep.subr.mxu0 0.0
        %409 = vmatpush1.msra.mxu0 0.0
        %410 = vmatprep.subr.mxu0 0.0
        %411 = vmatpush1.msra.mxu0 0.0
        %412 = vmatprep.subr.mxu0 0.0
        %413 = vmatpush1.msra.mxu0 0.0
        %414 = vmatprep.subr.mxu0 0.0
        %415 = vmatpush1.msra.mxu0 0.0
        %416 = vmatprep.subr.mxu0 0.0
        %417 = vmatpush1.msra.mxu0 0.0
        %418 = vmatprep.subr.mxu0 0.0
        %419 = vmatpush1.msra.mxu0 0.0
        %420 = vmatprep.subr.mxu0 0.0
        %421 = vmatpush1.msra.mxu0 0.0
        %422 = vmatprep.subr.mxu0 0.0
        %423 = vmatpush1.msra.mxu0 0.0
        %424 = vmatprep.subr.mxu0 0.0
        %425 = vmatpush1.msra.mxu0 0.0
        %426 = vmatprep.subr.mxu0 0.0
        %427 = vmatpush1.msra.mxu0 0.0
        %428 = vmatprep.subr.mxu0 0.0
        %429 = vmatpush1.msra.mxu0 0.0
        %430 = vmatprep.subr.mxu0 0.0
        %431 = vmatpush1.msra.mxu0 0.0
        %432 = vmatprep.subr.mxu0 0.0
        %433 = vmatpush1.msra.mxu0 0.0
        %434 = vmatprep.subr.mxu0 0.0
        %435 = vmatpush1.msra.mxu0 0.0
        %436 = vmatprep.subr.mxu0 0.0
        %437 = vmatpush1.msra.mxu0 0.0
        %438 = vmatprep.subr.mxu0 0.0
        %439 = vmatpush1.msra.mxu0 0.0
        %440 = vmatprep.subr.mxu0 0.0
        %441 = vmatpush1.msra.mxu0 0.0
        %442 = vmatprep.subr.mxu0 0.0
        %443 = vmatpush1.msra.mxu0 0.0
        %444 = vmatprep.subr.mxu0 0.0
        %445 = vmatpush1.msra.mxu0 0.0
        %446 = vmatprep.subr.mxu0 0.0
        %447 = vmatpush1.msra.mxu0 0.0
        %448 = vmatprep.subr.mxu0 0.0
        %449 = vmatpush1.msra.mxu0 0.0
        %450 = vmatprep.subr.mxu0 0.0
        %451 = vmatpush1.msra.mxu0 0.0
        %452 = vmatprep.subr.mxu0 0.0
        %453 = vmatpush1.msra.mxu0 0.0
        %454 = vmatprep.subr.mxu0 0.0
        %455 = vmatpush1.msra.mxu0 0.0
        %456 = vmatprep.subr.mxu0 0.0
        %457 = vmatpush1.msra.mxu0 0.0
        %458 = vmatprep.mubr.f32.mxu0 0.0
        %459 = vmatmul.mubr.f32.gmra.mrb[0].mxu0 %v388
        %v460 = vpop.f32.mrb[0].mxu0
        %v461 = vadd.f32 0.0, %v460
        %v462 = vpop.f32.mrb[0].mxu0
        %463 = vdwg.mxu0
        %vm464 = vcmask 31744
        %v466 = vsel %vm464, %v306, 0
        %vm468 = vcmask 1043456
        %v470 = vsel %vm468, %v310, 0
        %472 = vmatprep.subr.mxu0 0.0
        %473 = vmatpush1.msra.mxu0 %v470
        %474 = vmatprep.subr.mxu0 0.0
        %475 = vmatpush1.msra.mxu0 0.0
        %476 = vmatprep.subr.mxu0 0.0
        %477 = vmatpush1.msra.mxu0 0.0
        %478 = vmatprep.subr.mxu0 0.0
        %479 = vmatpush1.msra.mxu0 0.0
        %480 = vmatprep.subr.mxu0 0.0
        %481 = vmatpush1.msra.mxu0 0.0
        %482 = vmatprep.subr.mxu0 0.0
        %483 = vmatpush1.msra.mxu0 0.0
        %484 = vmatprep.subr.mxu0 0.0
        %485 = vmatpush1.msra.mxu0 0.0
        %486 = vmatprep.subr.mxu0 0.0
        %487 = vmatpush1.msra.mxu0 0.0
        %488 = vmatprep.subr.mxu0 0.0
        %489 = vmatpush1.msra.mxu0 0.0
        %490 = vmatprep.subr.mxu0 0.0
        %491 = vmatpush1.msra.mxu0 0.0
        %492 = vmatprep.subr.mxu0 0.0
        %493 = vmatpush1.msra.mxu0 0.0
        %494 = vmatprep.subr.mxu0 0.0
        %495 = vmatpush1.msra.mxu0 0.0
        %496 = vmatprep.subr.mxu0 0.0
        %497 = vmatpush1.msra.mxu0 0.0
        %498 = vmatprep.subr.mxu0 0.0
        %499 = vmatpush1.msra.mxu0 0.0
        %500 = vmatprep.subr.mxu0 0.0
        %501 = vmatpush1.msra.mxu0 0.0
        %502 = vmatprep.subr.mxu0 0.0
        %503 = vmatpush1.msra.mxu0 0.0
        %504 = vmatprep.subr.mxu0 0.0
        %505 = vmatpush1.msra.mxu0 0.0
        %506 = vmatprep.subr.mxu0 0.0
        %507 = vmatpush1.msra.mxu0 0.0
        %508 = vmatprep.subr.mxu0 0.0
        %509 = vmatpush1.msra.mxu0 0.0
        %510 = vmatprep.subr.mxu0 0.0
        %511 = vmatpush1.msra.mxu0 0.0
        %512 = vmatprep.subr.mxu0 0.0
        %513 = vmatpush1.msra.mxu0 0.0
        %514 = vmatprep.subr.mxu0 0.0
        %515 = vmatpush1.msra.mxu0 0.0
        %516 = vmatprep.subr.mxu0 0.0
        %517 = vmatpush1.msra.mxu0 0.0
        %518 = vmatprep.subr.mxu0 0.0
        %519 = vmatpush1.msra.mxu0 0.0
        %520 = vmatprep.subr.mxu0 0.0
        %521 = vmatpush1.msra.mxu0 0.0
        %522 = vmatprep.subr.mxu0 0.0
        %523 = vmatpush1.msra.mxu0 0.0
        %524 = vmatprep.subr.mxu0 0.0
        %525 = vmatpush1.msra.mxu0 0.0
        %526 = vmatprep.subr.mxu0 0.0
        %527 = vmatpush1.msra.mxu0 0.0
        %528 = vmatprep.subr.mxu0 0.0
        %529 = vmatpush1.msra.mxu0 0.0
        %530 = vmatprep.subr.mxu0 0.0
        %531 = vmatpush1.msra.mxu0 0.0
        %532 = vmatprep.subr.mxu0 0.0
        %533 = vmatpush1.msra.mxu0 0.0
        %534 = vmatprep.subr.mxu0 0.0
        %535 = vmatpush1.msra.mxu0 0.0
        %536 = vmatprep.mubr.f32.mxu0 0.0
        %537 = vmatmul.mubr.f32.gmra.mrb[0].mxu0 %v466
        %v538 = vpop.f32.mrb[0].mxu0
        %v539 = vadd.f32 %v461, %v538
        %v540 = vpop.f32.mrb[0].mxu0
        %541 = vdwg.mxu0
        %543 = vset.pattern.permute.xlu0 0
        %544 = vperm.xlu0 %543, %v309
        %v545 = vpop.permute.xlu0 %544
        %v547 = vadd.f32 %v539, %v545
        %vm548 = vcmask 130048
        %549 = vst.msk [vmem:[%s290] sm:$0xff] %vm548, %v547
        %s550 = sand.u32 %s185, 1
        %s551 = scalar_lea.sflag [#allocation3], %s550
        %s552 = sand.u32 %s185, 1
        %s553 = smul.addr %s552, 8
        %s554 = scalar_lea.vmem [#allocation2], %s553
        // Predicated region
        $region45: #{tpu_custom_call.1} parent=43 // pred_check
          %p555 = pneg %p195
        $region46: #{tpu_custom_call.1} parent=43 // pred_check_branch
          %557 = sbr.rel (%p555) target = $region48
        $region47: #{tpu_custom_call.1} parent=43 // pred_region
          %s559 = ssub.s32 128, 128
          %560 = vsyncadd %s551, %s559
          %s561 = sadd.s32 %s25, %s24
          %s562 = smul.addr %s561, 128
          %s563 = scalar_lea.hbm %s6, %s562
          %s565 = sshll.u32 %s554, 4
          %s566 = int_to_ptr.vmem [resolvable:$true] %s565
          %568 = dma.vmem_to_hbm [thread:$0]  %s566, 128, %s563, %s551
        $region48: #{tpu_custom_call.1} parent=43 // pred_fallthru
          _
      $region44: #{tpu_custom_call.1} parent=5 // pred_fallthru
        _
      %p569 = scmp.le.s32.totalorder 2, %s15
      // Predicated region
      $region49: #{tpu_custom_call.1} parent=5 // pred_check
        %p570 = pneg %p569
      $region50: #{tpu_custom_call.1} parent=5 // pred_check_branch
        %572 = sbr.rel (%p570) target = $region52
      $region51: #{tpu_custom_call.1} parent=5 // pred_region
        %s573 = ssub.s32 %s15, 2
        // Predicated region
        $region53: #{tpu_custom_call.1} parent=51 // pred_check
          %p574 = pneg %p201
        $region54: #{tpu_custom_call.1} parent=51 // pred_check_branch
          %576 = sbr.rel (%p574) target = $region56
        $region55: #{tpu_custom_call.1} parent=51 // pred_region
          %s577 = sand.u32 %s186, 1
          %s578 = scalar_lea.sflag [#allocation3], %s577
          %s579 = sand.u32 %s186, 1
          %s580 = smul.addr %s579, 8
          %s581 = scalar_lea.vmem [#allocation2], %s580
          %582 = dma.done %s578, 128
        $region56: #{tpu_custom_call.1} parent=51 // pred_fallthru
          _
      $region52: #{tpu_custom_call.1} parent=5 // pred_fallthru
        _
    $region6: #{tpu_custom_call.1} parent=1 // loop_footer
      %s19 = sadd.s32 1, %s15
    $region7: #{tpu_custom_call.1} parent=1 // loop_footer_branch
      %14 = sbr.rel target = $region3
    $region8: #{tpu_custom_call.1} parent=1 // loop_exit
      _
    %583 = vsyncpa [#allocation3], 1
    %s584 = scalar_lea.sflag [#allocation3], 1
    %585 = vsyncpa %s584, 1

</llo_original>
